<compile_context>
chip_gen: v7x
topology: tpu7x:2x2x1
jax: 0.10.0
libtpu: 0.0.40
codegen_flags: <defaults>
</compile_context>

<pallas_src>
import math
import functools

import jax
import jax.numpy as jnp
from jax.experimental import pallas as pl
from jax.experimental.pallas import tpu as pltpu


# ----------------------------------------------------------------------------
# helpers
# ----------------------------------------------------------------------------

def _round_up(x, m):
    return (x + m - 1) // m * m


def _pad2d(x, rp, cp):
    r, c = x.shape
    if r == rp and c == cp:
        return x
    return jnp.pad(x, ((0, rp - r), (0, cp - c)))


# ----------------------------------------------------------------------------
# Pallas kernels
# ----------------------------------------------------------------------------

def _matmul_kernel(x_ref, w_ref, b_ref, o_ref, acc_ref):
    # out = x @ W + b, accumulated over the K grid axis.
    k = pl.program_id(2)

    @pl.when(k == 0)
    def _():
        acc_ref[...] = jnp.zeros_like(acc_ref)

    acc_ref[...] += jnp.dot(x_ref[...], w_ref[...],
                            preferred_element_type=jnp.float32)

    @pl.when(k == pl.num_programs(2) - 1)
    def _():
        o_ref[...] = (acc_ref[...] + b_ref[...]).astype(o_ref.dtype)


def _scale_add_kernel(a_ref, b_ref, o_ref, *, scale):
    # out = a * sqrt(d_model) + b   (embedding combine, one mem-bound pass)
    o_ref[...] = a_ref[...] * scale + b_ref[...]


def _add_ln_kernel(x_ref, y_ref, g_ref, b_ref, o_ref):
    # out = LayerNorm(x + y)  -- residual add fused into the LN pass.
    x = x_ref[...].astype(jnp.float32) + y_ref[...].astype(jnp.float32)
    mu = jnp.mean(x, axis=-1, keepdims=True)
    var = jnp.mean((x - mu) ** 2, axis=-1, keepdims=True)
    y = (x - mu) * jax.lax.rsqrt(var + 1e-5)
    o_ref[...] = (y * g_ref[...] + b_ref[...]).astype(o_ref.dtype)


def _attn_kernel(q_ref, k_ref, v_ref, m_ref, o_ref, *, scale):
    # One batch element, ALL heads at once: softmax(q k^T / sqrt(hd) + mask) @ v
    q = q_ref[0].astype(jnp.float32) * scale          # (nh, seq, hd) -- pre-scaled q
    k = k_ref[0].astype(jnp.float32)                  # (nh, seq, hd)
    v = v_ref[0].astype(jnp.float32)                  # (nh, seq, hd)
    m = m_ref[0, 0]                                   # (1, seq); 1 = keep, 0 = masked

    s = jnp.einsum('hqd,hkd->hqk', q, k, preferred_element_type=jnp.float32)
    s = jnp.where(m == 0.0, -1e10, s)                 # masked_fill(mask == 0, -1e10)
    s = s - jnp.max(s, axis=-1, keepdims=True)
    p = jnp.exp(s)
    # fully-masked rows give uniform weights (matches PyTorch masked_fill behaviour)
    p = p * pl.reciprocal(jnp.sum(p, axis=-1, keepdims=True), approx=True)
    o = jnp.einsum('hqk,hkd->hqd', p, v, preferred_element_type=jnp.float32)
    o_ref[0] = o.astype(o_ref.dtype)


def _moe_kernel(x_ref, w1_ref, b1_ref, w2_ref, b2_ref, comb_ref, o_ref, acc_ref):
    # Dense Switch-MoE (drop_tokens=False): every expert processes the token block,
    # but the top-1 combine weights are applied in-kernel and accumulated into a
    # single (tt, D) output resident in VMEM across the expert grid axis.
    e = pl.program_id(1)

    @pl.when(e == 0)
    def _():
        acc_ref[...] = jnp.zeros_like(acc_ref)

    x = x_ref[...]
    h = jnp.dot(x, w1_ref[0], preferred_element_type=jnp.float32) + b1_ref[0]
    h = jnp.maximum(h, 0.0)
    y = jnp.dot(h, w2_ref[0], preferred_element_type=jnp.float32) + b2_ref[0]
    acc_ref[...] += comb_ref[0] * y                   # (tt, 1) * (tt, D)

    @pl.when(e == pl.num_programs(1) - 1)
    def _():
        o_ref[...] = acc_ref[...].astype(o_ref.dtype)


# ----------------------------------------------------------------------------
# Pallas wrappers
# ----------------------------------------------------------------------------

def pallas_linear(x, w, b, *, bm=256, bn=256, bk=256):
    """Tiled matmul out = x @ w + b.  Tiles are 256-multiples (or the full dim when
    smaller); inputs are zero-padded to tile multiples when the dim is not divisible."""
    M, K = x.shape
    _, N = w.shape
    tm = M if M <= bm else bm
    tk = K if K <= bk else bk
    tn = N if N <= bn else bn
    Mp, Kp, Np = _round_up(M, tm), _round_up(K, tk), _round_up(N, tn)

    xp = _pad2d(x, Mp, Kp)
    wp = _pad2d(w, Kp, Np)
    bp = _pad2d(b.reshape(1, N), 1, Np)

    out = pl.pallas_call(
        _matmul_kernel,
        out_shape=jax.ShapeDtypeStruct((Mp, Np), x.dtype),
        grid=(Mp // tm, Np // tn, Kp // tk),
        in_specs=[pl.BlockSpec((tm, tk), lambda i, j, k: (i, k)),
                  pl.BlockSpec((tk, tn), lambda i, j, k: (k, j)),
                  pl.BlockSpec((1, tn), lambda i, j, k: (0, j))],
        out_specs=pl.BlockSpec((tm, tn), lambda i, j, k: (i, j)),
        scratch_shapes=[pltpu.VMEM((tm, tn), jnp.float32)],
        compiler_params=pltpu.CompilerParams(
            dimension_semantics=("parallel", "parallel", "arbitrary")),
    )(xp, wp, bp)
    if Mp != M or Np != N:
        out = out[:M, :N]
    return out


def pallas_scale_add(a, b, scale, *, br=512):
    M, D = a.shape
    tr = M if M <= br else br
    Mp = _round_up(M, tr)
    ap, bp = _pad2d(a, Mp, D), _pad2d(b, Mp, D)
    kern = functools.partial(_scale_add_kernel, scale=scale)
    out = pl.pallas_call(
        kern,
        out_shape=jax.ShapeDtypeStruct((Mp, D), a.dtype),
        grid=(Mp // tr,),
        in_specs=[pl.BlockSpec((tr, D), lambda i: (i, 0)),
                  pl.BlockSpec((tr, D), lambda i: (i, 0))],
        out_specs=pl.BlockSpec((tr, D), lambda i: (i, 0)),
        compiler_params=pltpu.CompilerParams(dimension_semantics=("parallel",)),
    )(ap, bp)
    return out[:M] if Mp != M else out


def pallas_add_layernorm(x, y, gamma, beta, *, br=512):
    """LayerNorm(x + y), tiled over rows."""
    M, D = x.shape
    tr = M if M <= br else br
    Mp = _round_up(M, tr)
    xp, yp = _pad2d(x, Mp, D), _pad2d(y, Mp, D)
    out = pl.pallas_call(
        _add_ln_kernel,
        out_shape=jax.ShapeDtypeStruct((Mp, D), x.dtype),
        grid=(Mp // tr,),
        in_specs=[pl.BlockSpec((tr, D), lambda i: (i, 0)),
                  pl.BlockSpec((tr, D), lambda i: (i, 0)),
                  pl.BlockSpec((1, D), lambda i: (0, 0)),
                  pl.BlockSpec((1, D), lambda i: (0, 0))],
        out_specs=pl.BlockSpec((tr, D), lambda i: (i, 0)),
        compiler_params=pltpu.CompilerParams(dimension_semantics=("parallel",)),
    )(xp, yp, gamma.reshape(1, D), beta.reshape(1, D))
    return out[:M] if Mp != M else out


def pallas_attention(q, k, v, mask):
    """q,k,v: (bs, nh, seq, hd); mask: (bs, 1, 1, seq).  One grid step per batch
    element, all heads processed together with a batched einsum."""
    bs, nh, seq, hd = q.shape
    kern = functools.partial(_attn_kernel, scale=1.0 / math.sqrt(hd))
    qkv_spec = pl.BlockSpec((1, nh, seq, hd), lambda b: (b, 0, 0, 0))
    return pl.pallas_call(
        kern,
        out_shape=jax.ShapeDtypeStruct((bs, nh, seq, hd), q.dtype),
        grid=(bs,),
        in_specs=[qkv_spec, qkv_spec, qkv_spec,
                  pl.BlockSpec((1, 1, 1, seq), lambda b: (b, 0, 0, 0))],
        out_specs=pl.BlockSpec((1, nh, seq, hd), lambda b: (b, 0, 0, 0)),
        compiler_params=pltpu.CompilerParams(dimension_semantics=("parallel",)),
    )(q, k, v, mask)


def pallas_moe_ffn(x, combine, w1, b1, w2, b2, *, bt=256):
    """x: (T, D); combine: (E, T, 1) top-1 gate*onehot weights;
    w1: (E, D, F); b1: (E, F); w2: (E, F, D); b2: (E, D).  Output: (T, D)."""
    T, D = x.shape
    E, _, F = w1.shape
    tt = T if T <= bt else bt
    Tp = _round_up(T, tt)
    xp = _pad2d(x, Tp, D)
    combp = combine if Tp == T else jnp.pad(combine, ((0, 0), (0, Tp - T), (0, 0)))

    out = pl.pallas_call(
        _moe_kernel,
        out_shape=jax.ShapeDtypeStruct((Tp, D), x.dtype),
        grid=(Tp // tt, E),
        in_specs=[pl.BlockSpec((tt, D), lambda t, e: (t, 0)),
                  pl.BlockSpec((1, D, F), lambda t, e: (e, 0, 0)),
                  pl.BlockSpec((1, 1, F), lambda t, e: (e, 0, 0)),
                  pl.BlockSpec((1, F, D), lambda t, e: (e, 0, 0)),
                  pl.BlockSpec((1, 1, D), lambda t, e: (e, 0, 0)),
                  pl.BlockSpec((1, tt, 1), lambda t, e: (e, t, 0))],
        out_specs=pl.BlockSpec((tt, D), lambda t, e: (t, 0)),
        scratch_shapes=[pltpu.VMEM((tt, D), jnp.float32)],
        compiler_params=pltpu.CompilerParams(
            dimension_semantics=("parallel", "arbitrary")),
    )(xp, w1, b1.reshape(E, 1, F), w2, b2.reshape(E, 1, D), combp)
    return out[:T] if Tp != T else out


# ----------------------------------------------------------------------------
# Parameter init + forward (glue in plain JAX)
# ----------------------------------------------------------------------------

def init_params(key, vocab_size, max_len, d_model, ff_dim, n_heads, n_experts, n_layers):
    def dense(k, shape):
        return jax.random.normal(k, shape, jnp.float32) * 0.02

    keys = jax.random.split(key, 2 + n_layers)
    params = {
        "tok_emb": dense(keys[0], (vocab_size, d_model)),
        "pos_emb": dense(keys[1], (max_len, d_model)),
        "layers": [],
    }
    for li in range(n_layers):
        lk = jax.random.split(keys[2 + li], 8)
        wq = dense(lk[0], (d_model, d_model))
        wk = dense(lk[1], (d_model, d_model))
        wv = dense(lk[2], (d_model, d_model))
        layer = {
            # QKV fused along the output dim (one matmul, lane-dense output).
            "wqkv": jnp.concatenate([wq, wk, wv], axis=1),
            "bqkv": jnp.zeros((3 * d_model,), jnp.float32),
            "wo": dense(lk[3], (d_model, d_model)), "bo": jnp.zeros((d_model,), jnp.float32),
            "ln1_g": jnp.ones((d_model,), jnp.float32), "ln1_b": jnp.zeros((d_model,), jnp.float32),
            "w_router": dense(lk[4], (d_model, n_experts)),
            "b_router": jnp.zeros((n_experts,), jnp.float32),
            "w1": dense(lk[5], (n_experts, d_model, ff_dim)),
            "b1": jnp.zeros((n_experts, ff_dim), jnp.float32),
            "w2": dense(lk[6], (n_experts, ff_dim, d_model)),
            "b2": jnp.zeros((n_experts, d_model), jnp.float32),
            "ln2_g": jnp.ones((d_model,), jnp.float32), "ln2_b": jnp.zeros((d_model,), jnp.float32),
        }
        params["layers"].append(layer)
    return params


def encoder_layer_forward(p, x, mask, n_heads):
    bs, seq, d = x.shape
    hd = d // n_heads
    xf = x.reshape(bs * seq, d)

    # --- multi-head self-attention (fused QKV projection) ---
    qkv = pallas_linear(xf, p["wqkv"], p["bqkv"])                      # (T, 3d)
    q, k, v = qkv[:, :d], qkv[:, d:2 * d], qkv[:, 2 * d:]

    def split_heads(t):
        return t.reshape(bs, seq, n_heads, hd).transpose(0, 2, 1, 3)

    attn = pallas_attention(split_heads(q), split_heads(k), split_heads(v), mask)
    attn = attn.transpose(0, 2, 1, 3).reshape(bs * seq, d)
    attn = pallas_linear(attn, p["wo"], p["bo"])

    # residual + layernorm fused (dropout = identity in eval mode)
    x1 = pallas_add_layernorm(xf, attn, p["ln1_g"], p["ln1_b"])

    # --- Switch-MoE feed-forward (top-1 routing, drop_tokens=False) ---
    logits = pallas_linear(x1, p["w_router"], p["b_router"])           # (T, E)
    probs = jax.nn.softmax(logits.astype(jnp.float32), axis=-1)
    gate = jnp.max(probs, axis=-1)                                     # (T,)
    expert_idx = jnp.argmax(probs, axis=-1)                            # (T,)
    E = p["w1"].shape[0]
    onehot = jax.nn.one_hot(expert_idx, E, dtype=x1.dtype)             # (T, E)
    combine = (onehot * gate.astype(x1.dtype)[:, None]).T[:, :, None]  # (E, T, 1)
    ff = pallas_moe_ffn(x1, combine, p["w1"], p["b1"], p["w2"], p["b2"])

    x2 = pallas_add_layernorm(x1, ff, p["ln2_g"], p["ln2_b"])
    return x2.reshape(bs, seq, d)


def encoder_forward(params, tokens, mask, n_heads):
    bs, seq = tokens.shape
    d_model = params["tok_emb"].shape[1]
    scale = math.sqrt(d_model)

    # Embedding gathers kept as JAX glue; scale + add runs in one Pallas pass.
    tok = jnp.take(params["tok_emb"], tokens.reshape(-1), axis=0)       # (T, d)
    pos_ids = jnp.broadcast_to(jnp.arange(seq), (bs, seq)).reshape(-1)
    pos = jnp.take(params["pos_emb"], pos_ids, axis=0)                  # (T, d)
    x = pallas_scale_add(tok, pos, scale).reshape(bs, seq, d_model)
    # TODO(synk): nn.Dropout is identity in eval mode; training-mode dropout not implemented.

    for layer_params in params["layers"]:
        x = encoder_layer_forward(layer_params, x, mask, n_heads)
    return x


# ----------------------------------------------------------------------------
# Main
# ----------------------------------------------------------------------------

if __name__ == "__main__":
    vocab_size, d_model, ff_dim, n_heads = 50, 32, 64, 4
    max_len, n_layers, n_experts = 16, 2, 2
    bs, seq = 2, 8

    key = jax.random.PRNGKey(0)
    k_param, k_tok = jax.random.split(key)

    params = init_params(k_param, vocab_size, max_len, d_model, ff_dim,
                         n_heads, n_experts, n_layers)

    tokens = jax.random.randint(k_tok, (bs, seq), 0, vocab_size, dtype=jnp.int32)
    # mask: 1 = attend, 0 = masked (e.g. padding); shape (bs, 1, 1, seq)
    mask = jnp.ones((bs, 1, 1, seq), jnp.float32).at[1, 0, 0, 6:].set(0.0)

    out = encoder_forward(params, tokens, mask, n_heads)
    out = jax.block_until_ready(out)

    assert out.shape == (bs, seq, d_model), out.shape
    assert bool(jnp.all(jnp.isfinite(out)))
    print("KERNEL_OK")
</pallas_src>

<mosaic_0001>
module attributes {stable_mosaic.version = 11 : i64} {
  func.func @_scale_add_kernel(%arg0: i32, %arg1: memref<16x32xf32, #tpu.memory_space<vmem>>, %arg2: memref<16x32xf32, #tpu.memory_space<vmem>>, %arg3: memref<16x32xf32, #tpu.memory_space<vmem>>) attributes {dimension_semantics = [#tpu.dimension_semantics<parallel>], iteration_bounds = array<i64: 1>, scalar_prefetch = 0 : i64, scratch_operands = 0 : i64, tpu.core_type = #tpu.core_type<tc>, window_params = [{transform_indices = @transform_0, window_bounds = array<i64: 16, 32>}, {transform_indices = @transform_1, window_bounds = array<i64: 16, 32>}, {transform_indices = @transform_2, window_bounds = array<i64: 16, 32>}]} {
    %c0 = arith.constant 0 : index
    %c0_0 = arith.constant 0 : index
    %0 = vector.load %arg1[%c0, %c0_0] : memref<16x32xf32, #tpu.memory_space<vmem>>, vector<16x32xf32>
    %cst = arith.constant 5.65685415 : f32
    %1 = vector.broadcast %cst : f32 to vector<16x32xf32>
    %2 = arith.mulf %0, %1 : vector<16x32xf32>
    %c0_1 = arith.constant 0 : index
    %c0_2 = arith.constant 0 : index
    %3 = vector.load %arg2[%c0_1, %c0_2] : memref<16x32xf32, #tpu.memory_space<vmem>>, vector<16x32xf32>
    %4 = arith.addf %2, %3 : vector<16x32xf32>
    %c0_3 = arith.constant 0 : index
    %c0_4 = arith.constant 0 : index
    %5 = vector.load %arg3[%c0_3, %c0_4] : memref<16x32xf32, #tpu.memory_space<vmem>>, vector<16x32xf32>
    tpu.vector_store %arg3[%c0_3, %c0_4], %4 {strides = array<i32>} : memref<16x32xf32, #tpu.memory_space<vmem>>, vector<16x32xf32>,
    return
  }
  func.func @transform_0(%arg0: i32) -> (i32, i32) {
    %c0_i32 = arith.constant 0 : i32
    %c0_i32_0 = arith.constant 0 : i32
    return %arg0, %c0_i32 : i32, i32
  }
  func.func @transform_1(%arg0: i32) -> (i32, i32) {
    %c0_i32 = arith.constant 0 : i32
    %c0_i32_0 = arith.constant 0 : i32
    return %arg0, %c0_i32 : i32, i32
  }
  func.func @transform_2(%arg0: i32) -> (i32, i32) {
    %c0_i32 = arith.constant 0 : i32
    %c0_i32_0 = arith.constant 0 : i32
    return %arg0, %c0_i32 : i32, i32
  }
}

</mosaic_0001>

<llo_original>
// kernel: tpu_custom_call.1
$region0: #{tpu_custom_call.1}
  #allocation0 [shape = 'u32[]', space=smem, size = 0x4, offset = 0x4, fixed_abs, tag = 'smem constant byte address 0x4 - core index']
  #allocation1 [shape = 'u32[144,128]{1,0:T(1,128)}', space=vmem, size = 0x12000, scoped, tag = 'internal scratch']
  %s0 = inlined_call_operand.hbm [shape: f32[16,32], index: 0, kind: input, shape index: {}]
  %s1 = inlined_call_operand.hbm [shape: f32[16,32], index: 1, kind: input, shape index: {}]
  %s2 = inlined_call_operand.hbm [shape: f32[16,32], index: 2, kind: output, shape index: {}]
  %s3 = sld [smem:[#allocation0]]
  $region26: #{tpu_custom_call.1} parent=0
    _
  %s5 = ssub.s32 1, %s3
  %s6 = scalar_select 0, %s5, %s3
  $region1: #{tpu_custom_call.1} parent=0
    #allocation2 [shape = 'u8[8192]{0}', space=vmem, size = 0x2000, scoped, tag = 'input window, operand 0, single buffered']
    #allocation3 [shape = 's32[1]{0}', space=sflag, size = 0x4, scoped, tag = 'scoped memory for tpu_custom_call.1']
    #allocation4 [shape = 's32[1]{0}', space=sflag, size = 0x4, scoped, tag = 'scoped memory for tpu_custom_call.1']
    #allocation5 [shape = 'u8[8192]{0}', space=vmem, size = 0x2000, scoped, tag = 'input window, operand 1, single buffered']
    #allocation6 [shape = 's32[1]{0}', space=sflag, size = 0x4, scoped, tag = 'scoped memory for tpu_custom_call.1']
    #allocation7 [shape = 'u8[8192]{0}', space=vmem, size = 0x2000, scoped, tag = 'output window, operand 0, single buffered']
    %7 = vsyncpa [#allocation3], 0
    %8 = vsyncpa [#allocation6], 0
    %9 = vsyncpa [#allocation4], 0
    // Predicated region
    $region2: #{tpu_custom_call.1} parent=1 // pred_check
      _
    $region3: #{tpu_custom_call.1} parent=1 // pred_check_branch
      %11 = sbr.rel (0) target = $region5
    $region4: #{tpu_custom_call.1} parent=1 // pred_region
      %s13 = ssub.s32 256, 256
      %14 = vsyncadd [#allocation3], %s13
      %s15 = sshll.u32 [#allocation2], 4
      %s16 = int_to_ptr.vmem [resolvable:$true] %s15
      %21 = dma.hbm_to_vmem [thread:$0]  %s0, 256, %s16, [#allocation3], 128, 128, 8
    $region5: #{tpu_custom_call.1} parent=1 // pred_fallthru
      _
    // Predicated region
    $region6: #{tpu_custom_call.1} parent=1 // pred_check
      _
    $region7: #{tpu_custom_call.1} parent=1 // pred_check_branch
      %23 = sbr.rel (0) target = $region9
    $region8: #{tpu_custom_call.1} parent=1 // pred_region
      %s25 = ssub.s32 256, 256
      %26 = vsyncadd [#allocation6], %s25
      %s27 = sshll.u32 [#allocation5], 4
      %s28 = int_to_ptr.vmem [resolvable:$true] %s27
      %33 = dma.hbm_to_vmem [thread:$0]  %s1, 256, %s28, [#allocation6], 128, 128, 8
    $region9: #{tpu_custom_call.1} parent=1 // pred_fallthru
      _
    // Predicated region
    $region10: #{tpu_custom_call.1} parent=1 // pred_check
      _
    $region11: #{tpu_custom_call.1} parent=1 // pred_check_branch
      %35 = sbr.rel (0) target = $region13
    $region12: #{tpu_custom_call.1} parent=1 // pred_region
      %36 = dma.done [#allocation3], 256
    $region13: #{tpu_custom_call.1} parent=1 // pred_fallthru
      _
    // Predicated region
    $region14: #{tpu_custom_call.1} parent=1 // pred_check
      _
    $region15: #{tpu_custom_call.1} parent=1 // pred_check_branch
      %38 = sbr.rel (0) target = $region17
    $region16: #{tpu_custom_call.1} parent=1 // pred_region
      %39 = dma.done [#allocation6], 256
    $region17: #{tpu_custom_call.1} parent=1 // pred_fallthru
      _
    %v40 = vld [vmem:[#allocation2] sm:$0xff]
    %v41 = vld [vmem:[#allocation2 + $0x8] sm:$0xff]
    %v42 = vmul.f32 %v40, 5.656854
    %v43 = vmul.f32 %v41, 5.656854
    %v44 = vld [vmem:[#allocation5] sm:$0xff]
    %v45 = vld [vmem:[#allocation5 + $0x8] sm:$0xff]
    %v46 = vadd.f32 %v42, %v44
    %v47 = vadd.f32 %v43, %v45
    %vm48 = vcmask 261120
    %49 = vst.msk [vmem:[#allocation7] sm:$0xff] %vm48, %v46
    %50 = vst.msk [vmem:[#allocation7 + $0x8] sm:$0xff] %vm48, %v47
    // Predicated region
    $region18: #{tpu_custom_call.1} parent=1 // pred_check
      _
    $region19: #{tpu_custom_call.1} parent=1 // pred_check_branch
      %52 = sbr.rel (0) target = $region21
    $region20: #{tpu_custom_call.1} parent=1 // pred_region
      %s54 = ssub.s32 256, 256
      %55 = vsyncadd [#allocation4], %s54
      %s56 = sshll.u32 [#allocation7], 4
      %s57 = int_to_ptr.vmem [resolvable:$true] %s56
      %62 = dma.vmem_to_hbm [thread:$0]  %s57, 256, %s2, [#allocation4], 128, 128, 8
    $region21: #{tpu_custom_call.1} parent=1 // pred_fallthru
      _
    // Predicated region
    $region22: #{tpu_custom_call.1} parent=1 // pred_check
      _
    $region23: #{tpu_custom_call.1} parent=1 // pred_check_branch
      %64 = sbr.rel (0) target = $region25
    $region24: #{tpu_custom_call.1} parent=1 // pred_region
      %65 = dma.done [#allocation4], 256
    $region25: #{tpu_custom_call.1} parent=1 // pred_fallthru
      _
    %66 = vsyncpa [#allocation3], 1
    %67 = vsyncpa [#allocation6], 1
    %68 = vsyncpa [#allocation4], 1

</llo_original>
